<compile_context>
chip_gen: v7x
topology: tpu7x:2x2x1
jax: 0.10.0
libtpu: 0.0.40
codegen_flags: <defaults>
</compile_context>

<pallas_src>
import jax
import jax.numpy as jnp
from jax.experimental import pallas as pl
from jax.experimental.pallas import tpu as pltpu

NEG_SLOPE = 0.01        # torch.nn.LeakyReLU default negative_slope
LANE = 128              # TPU lane width
BF16_SUBLANE = 16       # bf16 packs 16 rows per (sublane-packed) vreg tile


def _round_up(n, m):
    return ((n + m - 1) // m) * m


def mlp_kernel(*refs):
    """Fused (Linear -> LeakyReLU [-> Dropout(identity)]) x N for one batch tile.

    refs = (x_ref, w0_ref, ..., w{L-1}_ref, o_ref)
      x_ref : (TM, IN_PAD)   bf16
      w_i   : (fi_pad, fo_pad) bf16, resident (constant index_map)
      o_ref : (TM, OUT_PAD)  out dtype (f32 by default)
    Matmuls run on the MXU with f32 accumulation; LeakyReLU is f32 on the VPU.
    Intermediate activations are cast to bf16 and fed directly to the next
    matmul (no explicit VMEM staging).
    """
    x_ref = refs[0]
    o_ref = refs[-1]
    w_refs = refs[1:-1]
    n_layers = len(w_refs)

    h = x_ref[...]                                      # bf16 MXU operand
    for j, w_ref in enumerate(w_refs):
        acc = jnp.dot(h, w_ref[...], preferred_element_type=jnp.float32)
        act = jnp.maximum(acc, NEG_SLOPE * acc)         # LeakyReLU, f32 (VPU)
        if j < n_layers - 1:
            h = act.astype(jnp.bfloat16)                # next-layer MXU operand
        else:
            o_ref[...] = act.astype(o_ref.dtype)


def mlp_reference(x, weights_t):
    """Pure-JAX f32 reference of the module's forward (eval mode)."""
    h = x.astype(jnp.float32)
    for w_t in weights_t:
        h = h @ w_t
        h = jnp.where(h >= 0, h, NEG_SLOPE * h)
    return h.astype(x.dtype)


def mlp_forward(x, weights_t, *, tm_max=1024, min_pallas_rows=256):
    """x: [batch, in_size] f32; weights_t: list of [in_f, out_f] f32 matrices.

    For batch < min_pallas_rows the padded Pallas call is pure overhead, so a
    plain XLA dot chain is used instead (same semantics, full f32).
    """
    batch, in_size = x.shape
    out_size = weights_t[-1].shape[1]

    if batch < min_pallas_rows:
        return mlp_reference(x, weights_t)

    in_pad = _round_up(in_size, LANE)
    out_pad = _round_up(out_size, LANE)

    # Zero-pad weights to 128-lane multiples and cast to bf16 (MXU operands).
    w_padded = []
    for w in weights_t:
        fi, fo = w.shape
        wp = jnp.zeros((_round_up(fi, LANE), _round_up(fo, LANE)), jnp.bfloat16)
        wp = wp.at[:fi, :fo].set(w.astype(jnp.bfloat16))
        w_padded.append(wp)

    # Widest intermediate activation (outputs of all but the last layer).
    if len(w_padded) > 1:
        hid_pad = max(w.shape[1] for w in w_padded[:-1])
    else:
        hid_pad = in_pad

    # Batch tiling: TM rows per grid step; bf16 blocks need TM % 16 == 0.
    if batch >= tm_max:
        tm = _round_up(tm_max, BF16_SUBLANE)
    else:
        tm = _round_up(batch, BF16_SUBLANE)
    batch_pad = _round_up(batch, tm)

    # bf16 activation stream (halves x DMA bytes vs f32).
    xp = jnp.zeros((batch_pad, in_pad), jnp.bfloat16)
    xp = xp.at[:batch, :in_size].set(x.astype(jnp.bfloat16))

    grid = (batch_pad // tm,)
    out_dtype = x.dtype
    out_itemsize = jnp.dtype(out_dtype).itemsize

    # Explicit scoped-VMEM budget (v5e default is only 16 MiB):
    #   double-buffered x/out tiles + (up to double-buffered) resident weights
    #   + compiler-managed intermediates + headroom.
    vmem_budget = (2 * tm * in_pad * 2
                   + 2 * tm * out_pad * out_itemsize
                   + 2 * sum(int(w.size) * 2 for w in w_padded)
                   + tm * hid_pad * 6
                   + (4 << 20))
    vmem_limit = int(min(max(vmem_budget, 16 << 20), 48 << 20))

    flops = 2 * batch_pad * sum(w.shape[0] * w.shape[1] for w in w_padded)
    bytes_accessed = (xp.size * 2
                      + sum(int(w.size) * 2 for w in w_padded)
                      + batch_pad * out_pad * out_itemsize)

    out_padded = pl.pallas_call(
        mlp_kernel,
        out_shape=jax.ShapeDtypeStruct((batch_pad, out_pad), out_dtype),
        grid_spec=pltpu.PrefetchScalarGridSpec(
            num_scalar_prefetch=0,
            grid=grid,
            in_specs=(
                # x: one (TM, IN_PAD) bf16 tile per grid step (pipelined).
                [pl.BlockSpec((tm, in_pad), lambda i: (i, 0))]
                # weights: full blocks, constant index -> fetched once,
                # resident in VMEM.  (Double-buffering them is wasted VMEM but
                # trivial at these sizes; pipeline_mode tuning left as a TODO.)
                + [pl.BlockSpec(w.shape, lambda i: (0, 0)) for w in w_padded]
            ),
            out_specs=pl.BlockSpec((tm, out_pad), lambda i: (i, 0)),
        ),
        compiler_params=pltpu.CompilerParams(
            # Batch tiles are independent.
            dimension_semantics=("parallel",),
            vmem_limit_bytes=vmem_limit,
        ),
        cost_estimate=pl.CostEstimate(
            flops=flops, transcendentals=0, bytes_accessed=bytes_accessed),
    )(xp, *w_padded)

    return out_padded[:batch, :out_size]


def init_mlp_params(key, in_size, out_size, n_hidden, dim_hidden):
    """nn.Linear(bias=False)-shaped weights, stored transposed [in_f, out_f]."""
    dims = [in_size] + [dim_hidden] * n_hidden + [out_size]
    weights_t = []
    for i in range(len(dims) - 1):
        key, sub = jax.random.split(key)
        fan_in, fan_out = dims[i], dims[i + 1]
        bound = 1.0 / jnp.sqrt(jnp.float32(fan_in))   # kaiming-uniform-ish
        w_t = jax.random.uniform(sub, (fan_in, fan_out), jnp.float32,
                                 minval=-bound, maxval=bound)
        weights_t.append(w_t)
    return weights_t


if __name__ == "__main__":
    # Small shapes consistent with the module's forward.
    batch, in_size, out_size = 8, 32, 16
    n_hidden, dim_hidden, dropout_rate = 2, 64, 0.1   # dropout inert in eval

    key = jax.random.PRNGKey(0)
    key, kx = jax.random.split(key)
    x = jax.random.normal(kx, (batch, in_size), jnp.float32)

    weights_t = init_mlp_params(key, in_size, out_size, n_hidden, dim_hidden)

    ref = mlp_reference(x, weights_t)

    # Force the Pallas path (min_pallas_rows=0) so the kernel itself is
    # exercised even at this tiny, overhead-bound shape.
    out = mlp_forward(x, weights_t, min_pallas_rows=0)
    out = jax.block_until_ready(out)

    assert out.shape == (batch, out_size), out.shape
    # Tolerance loosened vs the f32 reference: matmul operands are bf16
    # (f32 accumulation); error at these fan-ins is ~1e-3.
    assert jnp.allclose(out, ref, atol=3e-2, rtol=3e-2), (
        "Pallas path mismatch vs reference, max abs err = "
        f"{float(jnp.max(jnp.abs(out - ref)))}")

    # Also exercise the default small-batch XLA fallback path.
    out_fb = jax.block_until_ready(mlp_forward(x, weights_t))
    assert jnp.allclose(out_fb, ref, atol=1e-5, rtol=1e-5), (
        "fallback path mismatch vs reference")

    print("KERNEL_OK")
</pallas_src>

<mosaic_0001>
module attributes {stable_mosaic.version = 11 : i64} {
  func.func @mlp_kernel(%arg0: i32, %arg1: memref<16x128xbf16, #tpu.memory_space<vmem>>, %arg2: memref<128x128xbf16, #tpu.memory_space<vmem>>, %arg3: memref<128x128xbf16, #tpu.memory_space<vmem>>, %arg4: memref<128x128xbf16, #tpu.memory_space<vmem>>, %arg5: memref<16x128xf32, #tpu.memory_space<vmem>>) attributes {dimension_semantics = [#tpu.dimension_semantics<parallel>], iteration_bounds = array<i64: 1>, scalar_prefetch = 0 : i64, scratch_operands = 0 : i64, tpu.core_type = #tpu.core_type<tc>, window_params = [{transform_indices = @transform_0, window_bounds = array<i64: 16, 128>}, {pipeline_mode = #tpu.pipeline_mode<synchronous>, transform_indices = @transform_1, window_bounds = array<i64: 128, 128>}, {pipeline_mode = #tpu.pipeline_mode<synchronous>, transform_indices = @transform_2, window_bounds = array<i64: 128, 128>}, {pipeline_mode = #tpu.pipeline_mode<synchronous>, transform_indices = @transform_3, window_bounds = array<i64: 128, 128>}, {transform_indices = @transform_4, window_bounds = array<i64: 16, 128>}]} {
    %c0 = arith.constant 0 : index
    %c0_0 = arith.constant 0 : index
    %0 = vector.load %arg1[%c0, %c0_0] : memref<16x128xbf16, #tpu.memory_space<vmem>>, vector<16x128xbf16>
    %c0_1 = arith.constant 0 : index
    %c0_2 = arith.constant 0 : index
    %1 = vector.load %arg2[%c0_1, %c0_2] : memref<128x128xbf16, #tpu.memory_space<vmem>>, vector<128x128xbf16>
    %cst = arith.constant dense<0.000000e+00> : vector<16x128xf32>
    %2 = tpu.matmul %0, %1, %cst {dimension_numbers = #tpu.dot_dimension_numbers<[1], [0], [0], [1], [0, 0, 1, 1], [], []>} : vector<16x128xbf16>, vector<128x128xbf16>, vector<16x128xf32> -> vector<16x128xf32>
    %cst_3 = arith.constant 0.00999999977 : f32
    %3 = vector.broadcast %cst_3 : f32 to vector<16x128xf32>
    %4 = arith.mulf %3, %2 : vector<16x128xf32>
    %5 = arith.maximumf %2, %4 : vector<16x128xf32>
    %6 = arith.truncf %5 : vector<16x128xf32> to vector<16x128xbf16>
    %c0_4 = arith.constant 0 : index
    %c0_5 = arith.constant 0 : index
    %7 = vector.load %arg3[%c0_4, %c0_5] : memref<128x128xbf16, #tpu.memory_space<vmem>>, vector<128x128xbf16>
    %cst_6 = arith.constant dense<0.000000e+00> : vector<16x128xf32>
    %8 = tpu.matmul %6, %7, %cst_6 {dimension_numbers = #tpu.dot_dimension_numbers<[1], [0], [0], [1], [0, 0, 1, 1], [], []>} : vector<16x128xbf16>, vector<128x128xbf16>, vector<16x128xf32> -> vector<16x128xf32>
    %cst_7 = arith.constant 0.00999999977 : f32
    %9 = vector.broadcast %cst_7 : f32 to vector<16x128xf32>
    %10 = arith.mulf %9, %8 : vector<16x128xf32>
    %11 = arith.maximumf %8, %10 : vector<16x128xf32>
    %12 = arith.truncf %11 : vector<16x128xf32> to vector<16x128xbf16>
    %c0_8 = arith.constant 0 : index
    %c0_9 = arith.constant 0 : index
    %13 = vector.load %arg4[%c0_8, %c0_9] : memref<128x128xbf16, #tpu.memory_space<vmem>>, vector<128x128xbf16>
    %cst_10 = arith.constant dense<0.000000e+00> : vector<16x128xf32>
    %14 = tpu.matmul %12, %13, %cst_10 {dimension_numbers = #tpu.dot_dimension_numbers<[1], [0], [0], [1], [0, 0, 1, 1], [], []>} : vector<16x128xbf16>, vector<128x128xbf16>, vector<16x128xf32> -> vector<16x128xf32>
    %cst_11 = arith.constant 0.00999999977 : f32
    %15 = vector.broadcast %cst_11 : f32 to vector<16x128xf32>
    %16 = arith.mulf %15, %14 : vector<16x128xf32>
    %17 = arith.maximumf %14, %16 : vector<16x128xf32>
    %c0_12 = arith.constant 0 : index
    %c0_13 = arith.constant 0 : index
    %18 = vector.load %arg5[%c0_12, %c0_13] : memref<16x128xf32, #tpu.memory_space<vmem>>, vector<16x128xf32>
    tpu.vector_store %arg5[%c0_12, %c0_13], %17 {strides = array<i32>} : memref<16x128xf32, #tpu.memory_space<vmem>>, vector<16x128xf32>,
    return
  }
  func.func @transform_0(%arg0: i32) -> (i32, i32) {
    %c0_i32 = arith.constant 0 : i32
    %c0_i32_0 = arith.constant 0 : i32
    return %arg0, %c0_i32 : i32, i32
  }
  func.func @transform_1(%arg0: i32) -> (i32, i32) {
    %c0_i32 = arith.constant 0 : i32
    %c0_i32_0 = arith.constant 0 : i32
    %c0_i32_1 = arith.constant 0 : i32
    return %c0_i32, %c0_i32_0 : i32, i32
  }
  func.func @transform_2(%arg0: i32) -> (i32, i32) {
    %c0_i32 = arith.constant 0 : i32
    %c0_i32_0 = arith.constant 0 : i32
    %c0_i32_1 = arith.constant 0 : i32
    return %c0_i32, %c0_i32_0 : i32, i32
  }
  func.func @transform_3(%arg0: i32) -> (i32, i32) {
    %c0_i32 = arith.constant 0 : i32
    %c0_i32_0 = arith.constant 0 : i32
    %c0_i32_1 = arith.constant 0 : i32
    return %c0_i32, %c0_i32_0 : i32, i32
  }
  func.func @transform_4(%arg0: i32) -> (i32, i32) {
    %c0_i32 = arith.constant 0 : i32
    %c0_i32_0 = arith.constant 0 : i32
    return %arg0, %c0_i32 : i32, i32
  }
}

</mosaic_0001>

<llo_original>
// kernel: tpu_custom_call.1
$region0: #{tpu_custom_call.1}
  #allocation0 [shape = 'u32[]', space=smem, size = 0x4, offset = 0x4, fixed_abs, tag = 'smem constant byte address 0x4 - core index']
  #allocation1 [shape = 'u32[144,128]{1,0:T(1,128)}', space=vmem, size = 0x12000, scoped, tag = 'internal scratch']
  %s0 = inlined_call_operand.hbm [shape: bf16[16,128], index: 0, kind: input, shape index: {}]
  %s1 = inlined_call_operand.hbm [shape: bf16[128,128], index: 1, kind: input, shape index: {}]
  %s2 = inlined_call_operand.hbm [shape: bf16[128,128], index: 2, kind: input, shape index: {}]
  %s3 = inlined_call_operand.hbm [shape: bf16[128,128], index: 3, kind: input, shape index: {}]
  %s4 = inlined_call_operand.hbm [shape: f32[16,128], index: 4, kind: output, shape index: {}]
  %s5 = sld [smem:[#allocation0]]
  $region42: #{tpu_custom_call.1} parent=0
    _
  %s7 = ssub.s32 1, %s5
  %s8 = scalar_select 0, %s7, %s5
  $region1: #{tpu_custom_call.1} parent=0
    #allocation2 [shape = 'u8[4096]{0}', space=vmem, size = 0x1000, scoped, tag = 'input window, operand 0, single buffered']
    #allocation3 [shape = 's32[1]{0}', space=sflag, size = 0x4, scoped, tag = 'scoped memory for tpu_custom_call.1']
    #allocation4 [shape = 's32[1]{0}', space=sflag, size = 0x4, scoped, tag = 'scoped memory for tpu_custom_call.1']
    #allocation5 [shape = 'u8[32768]{0}', space=vmem, size = 0x8000, scoped, tag = 'input window, operand 1, single buffered']
    #allocation6 [shape = 's32[1]{0}', space=sflag, size = 0x4, scoped, tag = 'scoped memory for tpu_custom_call.1']
    #allocation7 [shape = 'u8[32768]{0}', space=vmem, size = 0x8000, scoped, tag = 'input window, operand 2, single buffered']
    #allocation8 [shape = 'u8[32768]{0}', space=vmem, size = 0x8000, scoped, tag = 'input window, operand 3, single buffered']
    #allocation9 [shape = 's32[1]{0}', space=sflag, size = 0x4, scoped, tag = 'scoped memory for tpu_custom_call.1']
    #allocation10 [shape = 'u8[8192]{0}', space=vmem, size = 0x2000, scoped, tag = 'output window, operand 0, single buffered']
    %9 = vsyncpa [#allocation3], 0
    %10 = vsyncpa [#allocation6], 0
    %11 = vsyncpa [#allocation9], 0
    %12 = vsyncpa [#allocation4], 0
    // Predicated region
    $region2: #{tpu_custom_call.1} parent=1 // pred_check
      _
    $region3: #{tpu_custom_call.1} parent=1 // pred_check_branch
      %14 = sbr.rel (0) target = $region5
    $region4: #{tpu_custom_call.1} parent=1 // pred_region
      %s16 = ssub.s32 128, 128
      %17 = vsyncadd [#allocation3], %s16
      %s18 = sshll.u32 [#allocation2], 4
      %s19 = int_to_ptr.vmem [resolvable:$true] %s18
      %24 = dma.hbm_to_vmem [thread:$0]  %s0, 128, %s19, [#allocation3], 64, 64, 4
    $region5: #{tpu_custom_call.1} parent=1 // pred_fallthru
      _
    // Predicated region
    $region6: #{tpu_custom_call.1} parent=1 // pred_check
      _
    $region7: #{tpu_custom_call.1} parent=1 // pred_check_branch
      %26 = sbr.rel (0) target = $region9
    $region8: #{tpu_custom_call.1} parent=1 // pred_region
      %s28 = ssub.s32 1024, 1024
      %29 = vsyncadd [#allocation6], %s28
      %s30 = sshll.u32 [#allocation5], 4
      %s31 = int_to_ptr.vmem [resolvable:$true] %s30
      %36 = dma.hbm_to_vmem [thread:$0]  %s1, 1024, %s31, [#allocation6], 64, 64, 4
    $region9: #{tpu_custom_call.1} parent=1 // pred_fallthru
      _
    // Predicated region
    $region10: #{tpu_custom_call.1} parent=1 // pred_check
      _
    $region11: #{tpu_custom_call.1} parent=1 // pred_check_branch
      %38 = sbr.rel (0) target = $region13
    $region12: #{tpu_custom_call.1} parent=1 // pred_region
      %s40 = ssub.s32 1024, 1024
      %41 = vsyncadd [#allocation6], %s40
      %s42 = sshll.u32 [#allocation7], 4
      %s43 = int_to_ptr.vmem [resolvable:$true] %s42
      %48 = dma.hbm_to_vmem [thread:$0]  %s2, 1024, %s43, [#allocation6], 64, 64, 4
    $region13: #{tpu_custom_call.1} parent=1 // pred_fallthru
      _
    // Predicated region
    $region14: #{tpu_custom_call.1} parent=1 // pred_check
      _
    $region15: #{tpu_custom_call.1} parent=1 // pred_check_branch
      %50 = sbr.rel (0) target = $region17
    $region16: #{tpu_custom_call.1} parent=1 // pred_region
      %s52 = ssub.s32 1024, 1024
      %53 = vsyncadd [#allocation9], %s52
      %s54 = sshll.u32 [#allocation8], 4
      %s55 = int_to_ptr.vmem [resolvable:$true] %s54
      %60 = dma.hbm_to_vmem [thread:$0]  %s3, 1024, %s55, [#allocation9], 64, 64, 4
    $region17: #{tpu_custom_call.1} parent=1 // pred_fallthru
      _
    // Predicated region
    $region18: #{tpu_custom_call.1} parent=1 // pred_check
      _
    $region19: #{tpu_custom_call.1} parent=1 // pred_check_branch
      %62 = sbr.rel (0) target = $region21
    $region20: #{tpu_custom_call.1} parent=1 // pred_region
      %63 = dma.done [#allocation3], 128
    $region21: #{tpu_custom_call.1} parent=1 // pred_fallthru
      _
    // Predicated region
    $region22: #{tpu_custom_call.1} parent=1 // pred_check
      _
    $region23: #{tpu_custom_call.1} parent=1 // pred_check_branch
      %65 = sbr.rel (0) target = $region25
    $region24: #{tpu_custom_call.1} parent=1 // pred_region
      %66 = dma.done [#allocation6], 1024
    $region25: #{tpu_custom_call.1} parent=1 // pred_fallthru
      _
    // Predicated region
    $region26: #{tpu_custom_call.1} parent=1 // pred_check
      _
    $region27: #{tpu_custom_call.1} parent=1 // pred_check_branch
      %68 = sbr.rel (0) target = $region29
    $region28: #{tpu_custom_call.1} parent=1 // pred_region
      %69 = dma.done [#allocation6], 1024
    $region29: #{tpu_custom_call.1} parent=1 // pred_fallthru
      _
    // Predicated region
    $region30: #{tpu_custom_call.1} parent=1 // pred_check
      _
    $region31: #{tpu_custom_call.1} parent=1 // pred_check_branch
      %71 = sbr.rel (0) target = $region33
    $region32: #{tpu_custom_call.1} parent=1 // pred_region
      %72 = dma.done [#allocation9], 1024
    $region33: #{tpu_custom_call.1} parent=1 // pred_fallthru
      _
    %v74 = vld [vmem:[#allocation2] sm:$0xf]
    %v75 = vld [vmem:[#allocation2 + $0x4] sm:$0xf]
    %v76 = vld [vmem:[#allocation5] sm:$0xf]
    %v77 = vld [vmem:[#allocation5 + $0x4] sm:$0xf]
    %v78 = vld [vmem:[#allocation5 + $0x8] sm:$0xf]
    %v79 = vld [vmem:[#allocation5 + $0xc] sm:$0xf]
    %v80 = vld [vmem:[#allocation5 + $0x10] sm:$0xf]
    %v81 = vld [vmem:[#allocation5 + $0x14] sm:$0xf]
    %v82 = vld [vmem:[#allocation5 + $0x18] sm:$0xf]
    %v83 = vld [vmem:[#allocation5 + $0x1c] sm:$0xf]
    %v84 = vld [vmem:[#allocation5 + $0x20] sm:$0xf]
    %v85 = vld [vmem:[#allocation5 + $0x24] sm:$0xf]
    %v86 = vld [vmem:[#allocation5 + $0x28] sm:$0xf]
    %v87 = vld [vmem:[#allocation5 + $0x2c] sm:$0xf]
    %v88 = vld [vmem:[#allocation5 + $0x30] sm:$0xf]
    %v89 = vld [vmem:[#allocation5 + $0x34] sm:$0xf]
    %v90 = vld [vmem:[#allocation5 + $0x38] sm:$0xf]
    %v91 = vld [vmem:[#allocation5 + $0x3c] sm:$0xf]
    %v94 = vunpack.c.l.b16 %v74
    %v95 = vunpack.c.l.b16 %v75
    %v96 = vpack.c.b16 %v95, %v94
    %v114 = vunpack.c.l.b16 %v76
    %v115 = vunpack.c.l.b16 %v77
    %v116 = vunpack.c.l.b16 %v78
    %v117 = vunpack.c.l.b16 %v79
    %v118 = vunpack.c.l.b16 %v80
    %v119 = vunpack.c.l.b16 %v81
    %v120 = vunpack.c.l.b16 %v82
    %v121 = vunpack.c.l.b16 %v83
    %v122 = vunpack.c.l.b16 %v84
    %v123 = vunpack.c.l.b16 %v85
    %v124 = vunpack.c.l.b16 %v86
    %v125 = vunpack.c.l.b16 %v87
    %v126 = vunpack.c.l.b16 %v88
    %v127 = vunpack.c.l.b16 %v89
    %v128 = vunpack.c.l.b16 %v90
    %v129 = vunpack.c.l.b16 %v91
    %v130 = vpack.c.b16 %v115, %v114
    %v131 = vpack.c.b16 %v117, %v116
    %v132 = vpack.c.b16 %v119, %v118
    %v133 = vpack.c.b16 %v121, %v120
    %v134 = vpack.c.b16 %v123, %v122
    %v135 = vpack.c.b16 %v125, %v124
    %v136 = vpack.c.b16 %v127, %v126
    %v137 = vpack.c.b16 %v129, %v128
    %146 = vmatprep.subr.bf16.mxu0 0
    %147 = vmatpush1.bf16.msra.mxu0 %v130
    %148 = vmatprep.subr.bf16.mxu0 0
    %149 = vmatpush1.bf16.msra.mxu0 %v131
    %150 = vmatprep.subr.bf16.mxu0 0
    %151 = vmatpush1.bf16.msra.mxu0 %v132
    %152 = vmatprep.subr.bf16.mxu0 0
    %153 = vmatpush1.bf16.msra.mxu0 %v133
    %154 = vmatprep.subr.bf16.mxu0 0
    %155 = vmatpush1.bf16.msra.mxu0 %v134
    %156 = vmatprep.subr.bf16.mxu0 0
    %157 = vmatpush1.bf16.msra.mxu0 %v135
    %158 = vmatprep.subr.bf16.mxu0 0
    %159 = vmatpush1.bf16.msra.mxu0 %v136
    %160 = vmatprep.subr.bf16.mxu0 0
    %161 = vmatpush1.bf16.msra.mxu0 %v137
    %162 = vmatprep.subr.bf16.mxu0 0
    %163 = vmatpush1.bf16.msra.mxu0 0
    %164 = vmatprep.subr.bf16.mxu0 0
    %165 = vmatpush1.bf16.msra.mxu0 0
    %166 = vmatprep.subr.bf16.mxu0 0
    %167 = vmatpush1.bf16.msra.mxu0 0
    %168 = vmatprep.subr.bf16.mxu0 0
    %169 = vmatpush1.bf16.msra.mxu0 0
    %170 = vmatprep.subr.bf16.mxu0 0
    %171 = vmatpush1.bf16.msra.mxu0 0
    %172 = vmatprep.subr.bf16.mxu0 0
    %173 = vmatpush1.bf16.msra.mxu0 0
    %174 = vmatprep.subr.bf16.mxu0 0
    %175 = vmatpush1.bf16.msra.mxu0 0
    %176 = vmatprep.subr.bf16.mxu0 0
    %177 = vmatpush1.bf16.msra.mxu0 0
    %178 = vmatprep.mubr.bf16.mxu0 0
    %179 = vmatmul.mubr.bf16.gmra.mrb[0].mxu0 %v96
    %v180 = vpop.f32.mrb[0].mxu0
    %v181 = vadd.f32 0.0, %v180
    %v182 = vpop.f32.mrb[0].mxu0
    %v183 = vpop.f32.mrb[0].mxu0
    %v184 = vadd.f32 0.0, %v183
    %v185 = vpop.f32.mrb[0].mxu0
    %186 = vdwg.mxu0
    %v187 = vmul.f32 %v181, 0.01
    %v188 = vmul.f32 %v184, 0.01
    %v189 = vmax.f32 %v181, %v187
    %v190 = vmax.f32 %v184, %v188
    %v191 = vpack.c.bf16 %v190, %v189
    %v192 = vld [vmem:[#allocation7] sm:$0xf]
    %v193 = vld [vmem:[#allocation7 + $0x4] sm:$0xf]
    %v194 = vld [vmem:[#allocation7 + $0x8] sm:$0xf]
    %v195 = vld [vmem:[#allocation7 + $0xc] sm:$0xf]
    %v196 = vld [vmem:[#allocation7 + $0x10] sm:$0xf]
    %v197 = vld [vmem:[#allocation7 + $0x14] sm:$0xf]
    %v198 = vld [vmem:[#allocation7 + $0x18] sm:$0xf]
    %v199 = vld [vmem:[#allocation7 + $0x1c] sm:$0xf]
    %v200 = vld [vmem:[#allocation7 + $0x20] sm:$0xf]
    %v201 = vld [vmem:[#allocation7 + $0x24] sm:$0xf]
    %v202 = vld [vmem:[#allocation7 + $0x28] sm:$0xf]
    %v203 = vld [vmem:[#allocation7 + $0x2c] sm:$0xf]
    %v204 = vld [vmem:[#allocation7 + $0x30] sm:$0xf]
    %v205 = vld [vmem:[#allocation7 + $0x34] sm:$0xf]
    %v206 = vld [vmem:[#allocation7 + $0x38] sm:$0xf]
    %v207 = vld [vmem:[#allocation7 + $0x3c] sm:$0xf]
    %v224 = vunpack.c.l.b16 %v192
    %v225 = vunpack.c.l.b16 %v193
    %v226 = vunpack.c.l.b16 %v194
    %v227 = vunpack.c.l.b16 %v195
    %v228 = vunpack.c.l.b16 %v196
    %v229 = vunpack.c.l.b16 %v197
    %v230 = vunpack.c.l.b16 %v198
    %v231 = vunpack.c.l.b16 %v199
    %v232 = vunpack.c.l.b16 %v200
    %v233 = vunpack.c.l.b16 %v201
    %v234 = vunpack.c.l.b16 %v202
    %v235 = vunpack.c.l.b16 %v203
    %v236 = vunpack.c.l.b16 %v204
    %v237 = vunpack.c.l.b16 %v205
    %v238 = vunpack.c.l.b16 %v206
    %v239 = vunpack.c.l.b16 %v207
    %v240 = vpack.c.b16 %v225, %v224
    %v241 = vpack.c.b16 %v227, %v226
    %v242 = vpack.c.b16 %v229, %v228
    %v243 = vpack.c.b16 %v231, %v230
    %v244 = vpack.c.b16 %v233, %v232
    %v245 = vpack.c.b16 %v235, %v234
    %v246 = vpack.c.b16 %v237, %v236
    %v247 = vpack.c.b16 %v239, %v238
    %256 = vmatprep.subr.bf16.mxu0 0
    %257 = vmatpush1.bf16.msra.mxu0 %v240
    %258 = vmatprep.subr.bf16.mxu0 0
    %259 = vmatpush1.bf16.msra.mxu0 %v241
    %260 = vmatprep.subr.bf16.mxu0 0
    %261 = vmatpush1.bf16.msra.mxu0 %v242
    %262 = vmatprep.subr.bf16.mxu0 0
    %263 = vmatpush1.bf16.msra.mxu0 %v243
    %264 = vmatprep.subr.bf16.mxu0 0
    %265 = vmatpush1.bf16.msra.mxu0 %v244
    %266 = vmatprep.subr.bf16.mxu0 0
    %267 = vmatpush1.bf16.msra.mxu0 %v245
    %268 = vmatprep.subr.bf16.mxu0 0
    %269 = vmatpush1.bf16.msra.mxu0 %v246
    %270 = vmatprep.subr.bf16.mxu0 0
    %271 = vmatpush1.bf16.msra.mxu0 %v247
    %272 = vmatprep.subr.bf16.mxu0 0
    %273 = vmatpush1.bf16.msra.mxu0 0
    %274 = vmatprep.subr.bf16.mxu0 0
    %275 = vmatpush1.bf16.msra.mxu0 0
    %276 = vmatprep.subr.bf16.mxu0 0
    %277 = vmatpush1.bf16.msra.mxu0 0
    %278 = vmatprep.subr.bf16.mxu0 0
    %279 = vmatpush1.bf16.msra.mxu0 0
    %280 = vmatprep.subr.bf16.mxu0 0
    %281 = vmatpush1.bf16.msra.mxu0 0
    %282 = vmatprep.subr.bf16.mxu0 0
    %283 = vmatpush1.bf16.msra.mxu0 0
    %284 = vmatprep.subr.bf16.mxu0 0
    %285 = vmatpush1.bf16.msra.mxu0 0
    %286 = vmatprep.subr.bf16.mxu0 0
    %287 = vmatpush1.bf16.msra.mxu0 0
    %288 = vmatprep.mubr.bf16.mxu0 0
    %289 = vmatmul.mubr.bf16.gmra.mrb[0].mxu0 %v191
    %v290 = vpop.f32.mrb[0].mxu0
    %v291 = vadd.f32 0.0, %v290
    %v292 = vpop.f32.mrb[0].mxu0
    %v293 = vpop.f32.mrb[0].mxu0
    %v294 = vadd.f32 0.0, %v293
    %v295 = vpop.f32.mrb[0].mxu0
    %296 = vdwg.mxu0
    %v297 = vmul.f32 %v291, 0.01
    %v298 = vmul.f32 %v294, 0.01
    %v299 = vmax.f32 %v291, %v297
    %v300 = vmax.f32 %v294, %v298
    %v301 = vpack.c.bf16 %v300, %v299
    %v302 = vld [vmem:[#allocation8] sm:$0xf]
    %v303 = vld [vmem:[#allocation8 + $0x4] sm:$0xf]
    %v304 = vld [vmem:[#allocation8 + $0x8] sm:$0xf]
    %v305 = vld [vmem:[#allocation8 + $0xc] sm:$0xf]
    %v306 = vld [vmem:[#allocation8 + $0x10] sm:$0xf]
    %v307 = vld [vmem:[#allocation8 + $0x14] sm:$0xf]
    %v308 = vld [vmem:[#allocation8 + $0x18] sm:$0xf]
    %v309 = vld [vmem:[#allocation8 + $0x1c] sm:$0xf]
    %v310 = vld [vmem:[#allocation8 + $0x20] sm:$0xf]
    %v311 = vld [vmem:[#allocation8 + $0x24] sm:$0xf]
    %v312 = vld [vmem:[#allocation8 + $0x28] sm:$0xf]
    %v313 = vld [vmem:[#allocation8 + $0x2c] sm:$0xf]
    %v314 = vld [vmem:[#allocation8 + $0x30] sm:$0xf]
    %v315 = vld [vmem:[#allocation8 + $0x34] sm:$0xf]
    %v316 = vld [vmem:[#allocation8 + $0x38] sm:$0xf]
    %v317 = vld [vmem:[#allocation8 + $0x3c] sm:$0xf]
    %v334 = vunpack.c.l.b16 %v302
    %v335 = vunpack.c.l.b16 %v303
    %v336 = vunpack.c.l.b16 %v304
    %v337 = vunpack.c.l.b16 %v305
    %v338 = vunpack.c.l.b16 %v306
    %v339 = vunpack.c.l.b16 %v307
    %v340 = vunpack.c.l.b16 %v308
    %v341 = vunpack.c.l.b16 %v309
    %v342 = vunpack.c.l.b16 %v310
    %v343 = vunpack.c.l.b16 %v311
    %v344 = vunpack.c.l.b16 %v312
    %v345 = vunpack.c.l.b16 %v313
    %v346 = vunpack.c.l.b16 %v314
    %v347 = vunpack.c.l.b16 %v315
    %v348 = vunpack.c.l.b16 %v316
    %v349 = vunpack.c.l.b16 %v317
    %v350 = vpack.c.b16 %v335, %v334
    %v351 = vpack.c.b16 %v337, %v336
    %v352 = vpack.c.b16 %v339, %v338
    %v353 = vpack.c.b16 %v341, %v340
    %v354 = vpack.c.b16 %v343, %v342
    %v355 = vpack.c.b16 %v345, %v344
    %v356 = vpack.c.b16 %v347, %v346
    %v357 = vpack.c.b16 %v349, %v348
    %366 = vmatprep.subr.bf16.mxu0 0
    %367 = vmatpush1.bf16.msra.mxu0 %v350
    %368 = vmatprep.subr.bf16.mxu0 0
    %369 = vmatpush1.bf16.msra.mxu0 %v351
    %370 = vmatprep.subr.bf16.mxu0 0
    %371 = vmatpush1.bf16.msra.mxu0 %v352
    %372 = vmatprep.subr.bf16.mxu0 0
    %373 = vmatpush1.bf16.msra.mxu0 %v353
    %374 = vmatprep.subr.bf16.mxu0 0
    %375 = vmatpush1.bf16.msra.mxu0 %v354
    %376 = vmatprep.subr.bf16.mxu0 0
    %377 = vmatpush1.bf16.msra.mxu0 %v355
    %378 = vmatprep.subr.bf16.mxu0 0
    %379 = vmatpush1.bf16.msra.mxu0 %v356
    %380 = vmatprep.subr.bf16.mxu0 0
    %381 = vmatpush1.bf16.msra.mxu0 %v357
    %382 = vmatprep.subr.bf16.mxu0 0
    %383 = vmatpush1.bf16.msra.mxu0 0
    %384 = vmatprep.subr.bf16.mxu0 0
    %385 = vmatpush1.bf16.msra.mxu0 0
    %386 = vmatprep.subr.bf16.mxu0 0
    %387 = vmatpush1.bf16.msra.mxu0 0
    %388 = vmatprep.subr.bf16.mxu0 0
    %389 = vmatpush1.bf16.msra.mxu0 0
    %390 = vmatprep.subr.bf16.mxu0 0
    %391 = vmatpush1.bf16.msra.mxu0 0
    %392 = vmatprep.subr.bf16.mxu0 0
    %393 = vmatpush1.bf16.msra.mxu0 0
    %394 = vmatprep.subr.bf16.mxu0 0
    %395 = vmatpush1.bf16.msra.mxu0 0
    %396 = vmatprep.subr.bf16.mxu0 0
    %397 = vmatpush1.bf16.msra.mxu0 0
    %398 = vmatprep.mubr.bf16.mxu0 0
    %399 = vmatmul.mubr.bf16.gmra.mrb[0].mxu0 %v301
    %v400 = vpop.f32.mrb[0].mxu0
    %v401 = vadd.f32 0.0, %v400
    %v402 = vpop.f32.mrb[0].mxu0
    %v403 = vpop.f32.mrb[0].mxu0
    %v404 = vadd.f32 0.0, %v403
    %v405 = vpop.f32.mrb[0].mxu0
    %406 = vdwg.mxu0
    %v407 = vmul.f32 %v401, 0.01
    %v408 = vmul.f32 %v404, 0.01
    %v409 = vmax.f32 %v401, %v407
    %v410 = vmax.f32 %v404, %v408
    %411 = vst [vmem:[#allocation10] sm:$0xff] %v409
    %412 = vst [vmem:[#allocation10 + $0x8] sm:$0xff] %v410
    // Predicated region
    $region34: #{tpu_custom_call.1} parent=1 // pred_check
      _
    $region35: #{tpu_custom_call.1} parent=1 // pred_check_branch
      %414 = sbr.rel (0) target = $region37
    $region36: #{tpu_custom_call.1} parent=1 // pred_region
      %s416 = ssub.s32 256, 256
      %417 = vsyncadd [#allocation4], %s416
      %s418 = sshll.u32 [#allocation10], 4
      %s419 = int_to_ptr.vmem [resolvable:$true] %s418
      %424 = dma.vmem_to_hbm [thread:$0]  %s419, 256, %s4, [#allocation4], 128, 128, 8
    $region37: #{tpu_custom_call.1} parent=1 // pred_fallthru
      _
    // Predicated region
    $region38: #{tpu_custom_call.1} parent=1 // pred_check
      _
    $region39: #{tpu_custom_call.1} parent=1 // pred_check_branch
      %426 = sbr.rel (0) target = $region41
    $region40: #{tpu_custom_call.1} parent=1 // pred_region
      %427 = dma.done [#allocation4], 256
    $region41: #{tpu_custom_call.1} parent=1 // pred_fallthru
      _
    %428 = vsyncpa [#allocation3], 1
    %429 = vsyncpa [#allocation6], 1
    %430 = vsyncpa [#allocation9], 1
    %431 = vsyncpa [#allocation4], 1

</llo_original>
